<compile_context>
chip_gen: v6e
topology: v6e:2x2x1
jax: 0.10.0
libtpu: 0.0.40
codegen_flags: <defaults>
</compile_context>

<pallas_src>
import numpy as np
import jax
import jax.numpy as jnp
from jax.experimental import pallas as pl
from jax.experimental.pallas import tpu as pltpu


def _gaussian_1d(scale):
    """1-D Gaussian taps g such that outer(g, g) == the module's 2-D kernel."""
    sigma = (1.0 / scale - 1.0) / 2.0
    ksize = 2 * round(sigma * 4) + 1          # always odd -> ka == kb
    ka = ksize // 2
    stride = int(1.0 / scale)
    t = np.arange(ksize, dtype=np.float32)
    mean = (ksize - 1) / 2.0
    g = np.exp(-((t - mean) ** 2) / (2.0 * sigma ** 2))
    g = (g / g.sum()).astype(np.float32)
    return g, ka, stride


def _band_matrix(g, ka, stride, n_in, n_out):
    """M[i, j] = g[i + ka - j*stride] (zero outside the band).

    x_row @ M == (zero-pad by ka, correlate with g, take every stride-th sample),
    i.e. one 1-D pass of the reference blur + decimation."""
    K = g.shape[0]
    M = np.zeros((n_in, n_out), np.float32)
    for j in range(n_out):
        base = j * stride - ka
        for k in range(K):
            i = base + k
            if 0 <= i < n_in:
                M[i, j] = g[k]
    return M


def _pick_channel_block(N, C):
    """Largest divisor of C that still yields >= 2 parallel grid steps (if possible).

    Keeps the channel fold (matmul M dimension) as large as possible while giving
    v7x's two TensorCores something to share at small batch."""
    target = min(2, N * C)
    for d in range(C, 0, -1):
        if C % d == 0 and N * (C // d) >= target:
            return d
    return C


def _const_spec(shape):
    """BlockSpec for a grid-invariant operand; single-buffered when supported."""
    idx = lambda n, g: (0,) * len(shape)
    try:
        return pl.BlockSpec(shape, idx, pipeline_mode=pl.Buffered(buffer_count=1))
    except Exception:  # runtime without pipeline_mode support -> default buffering
        return pl.BlockSpec(shape, idx)


def _make_pyramid_kernel(cb, H_pad, W, scale_dims):
    """One grid step = one (batch element, channel group); computes every scale."""
    n_scales = len(scale_dims)

    def kernel(*refs):
        x_ref = refs[0]                            # (1, cb, H_pad, W)
        mat_refs = refs[1:1 + 2 * n_scales]        # AT_0, B_0, AT_1, B_1, ...
        out_refs = refs[1 + 2 * n_scales:]         # (1, cb, H_out_s, W_out_s) each

        # Fold channels into the matmul M dimension (free relayout: H_pad % 8 == 0).
        # Native dtype -> MXU; no forced upcast.
        x2 = x_ref[0].reshape(cb * H_pad, W)

        for s, (H_out, W_out) in enumerate(scale_dims):
            # Horizontal blur + zero-pad + decimate: one matmul for ALL channels.
            B = mat_refs[2 * s + 1][...]           # (W, W_out) — loaded at point of use
            t = jnp.dot(x2, B, preferred_element_type=jnp.float32)     # (cb*H_pad, W_out)
            t3 = t.reshape(cb, H_pad, W_out)       # split leading dim (free, H_pad % 8 == 0)

            # Vertical pass: single batched contraction over the channel group.
            AT = mat_refs[2 * s][...]              # (H_out, H_pad) — loaded at point of use
            ATb = jnp.broadcast_to(AT, (cb, H_out, H_pad))
            o3 = jax.lax.dot_general(
                ATb, t3,
                dimension_numbers=(((2,), (1,)), ((0,), (0,))),
                preferred_element_type=jnp.float32)                    # (cb, H_out, W_out)

            # One wide contiguous store per scale per grid step.
            out_refs[s][0] = o3.astype(out_refs[s].dtype)

    return kernel


def _pyramid_downsample(x, scales):
    """All non-unit scales of the pyramid in one fused pallas_call."""
    N, C, H, W = x.shape
    itemsize = x.dtype.itemsize
    cb = _pick_channel_block(N, C)
    G = C // cb

    # Pad H to a multiple of 8 so the (cb, H, W) -> (cb*H, W) fold is layout-free.
    # Padded rows are killed by zero columns appended to AT below.
    H_pad = -(-H // 8) * 8
    x_in = x if H_pad == H else jnp.pad(x, ((0, 0), (0, 0), (0, H_pad - H), (0, 0)))

    mats = []
    scale_dims = []
    in_specs = [pl.BlockSpec((1, cb, H_pad, W), lambda n, g: (n, g, 0, 0))]
    out_specs = []
    out_shapes = []
    vmem_est = 2 * cb * H_pad * W * itemsize                  # double-buffered x block

    for scale in scales:
        g1d, ka, stride = _gaussian_1d(scale)
        H_out = -(-H // stride)                               # ceil(H / stride)
        W_out = -(-W // stride)
        AT = np.ascontiguousarray(_band_matrix(g1d, ka, stride, H, H_out).T)  # (H_out, H)
        if H_pad != H:
            AT = np.pad(AT, ((0, 0), (0, H_pad - H)))         # zero cols for padded rows
        B = _band_matrix(g1d, ka, stride, W, W_out)           # (W, W_out)
        mats += [jnp.asarray(AT), jnp.asarray(B)]             # f32 taps (accuracy budget)
        in_specs += [_const_spec(AT.shape), _const_spec(B.shape)]
        out_specs.append(pl.BlockSpec((1, cb, H_out, W_out), lambda n, g: (n, g, 0, 0)))
        out_shapes.append(jax.ShapeDtypeStruct((N, C, H_out, W_out), x.dtype))
        scale_dims.append((H_out, W_out))

        vmem_est += 2 * cb * H_out * W_out * itemsize                         # out block
        vmem_est += (H_out * H_pad + W * W_out) * 4                           # AT, B
        vmem_est += cb * (H_pad * W_out + H_out * H_pad + H_out * W_out) * 4  # live values

    # Generation-aware VMEM budget (v7x: 64 MiB physical).  Only override the
    # default scoped limit when the working set is actually large.
    ck = dict(dimension_semantics=("parallel", "parallel"))
    if vmem_est > (12 << 20):
        try:
            cap = pltpu.get_tpu_info().vmem_capacity_bytes
        except Exception:
            cap = 64 << 20
        ck["vmem_limit_bytes"] = int(min(max(2 * vmem_est, 32 << 20), int(0.75 * cap)))

    results = pl.pallas_call(
        _make_pyramid_kernel(cb, H_pad, W, scale_dims),
        out_shape=tuple(out_shapes),
        grid=(N, G),
        in_specs=in_specs,
        out_specs=tuple(out_specs),
        compiler_params=pltpu.CompilerParams(**ck),
    )(x_in, *mats)
    if not isinstance(results, (tuple, list)):
        results = (results,)
    return list(results)


class ImagePyramide:
    """JAX/Pallas port of the PyTorch ImagePyramide module (forward pass)."""

    def __init__(self, scales, num_channels):
        self.scales = list(scales)
        self.num_channels = num_channels

    def __call__(self, x):
        assert x.shape[1] == self.num_channels
        non_unit = [s for s in self.scales if s != 1]
        downs = _pyramid_downsample(x, non_unit) if non_unit else []
        out_dict = {}
        it = iter(downs)
        for scale in self.scales:
            key = "prediction_" + str(scale).replace("-", ".")
            out_dict[key] = x if scale == 1 else next(it)
        return out_dict


def _reference_downsample(x, scale):
    """Pure-XLA depthwise-conv reference of AntiAliasInterpolation2d.forward."""
    if scale == 1:
        return x
    sigma = (1.0 / scale - 1.0) / 2.0
    ksize = 2 * round(sigma * 4) + 1
    ka = ksize // 2
    kb = ka
    stride = int(1.0 / scale)
    t = np.arange(ksize, dtype=np.float32)
    mean = (ksize - 1) / 2.0
    e = np.exp(-((t - mean) ** 2) / (2.0 * sigma ** 2))
    k2 = np.outer(e, e)
    k2 = (k2 / k2.sum()).astype(np.float32)
    C = x.shape[1]
    w = jnp.tile(jnp.asarray(k2)[None, None], (C, 1, 1, 1))     # (C, 1, K, K)
    xp = jnp.pad(x, ((0, 0), (0, 0), (ka, kb), (ka, kb)))
    out = jax.lax.conv_general_dilated(
        xp, w, window_strides=(1, 1), padding="VALID",
        dimension_numbers=("NCHW", "OIHW", "NCHW"), feature_group_count=C)
    return out[:, :, ::stride, ::stride]


if __name__ == "__main__":
    key = jax.random.PRNGKey(0)
    x = jax.random.normal(key, (2, 4, 16, 16), dtype=jnp.float32)

    pyramide = ImagePyramide(scales=[1, 0.5, 0.25], num_channels=4)
    out = pyramide(x)

    expected = {
        "prediction_1": (2, 4, 16, 16),
        "prediction_0.5": (2, 4, 8, 8),
        "prediction_0.25": (2, 4, 4, 4),
    }
    for k, v in out.items():
        jax.block_until_ready(v)
        assert v.shape == expected[k], (k, v.shape, expected[k])
        assert v.dtype == jnp.float32

    # Numerical check against a plain-XLA depthwise-conv reference.
    for scale in [1, 0.5, 0.25]:
        name = "prediction_" + str(scale).replace("-", ".")
        ref = _reference_downsample(x, scale)
        err = float(jnp.max(jnp.abs(out[name] - ref)))
        assert err < 1e-3, (name, err)

    print("KERNEL_OK")
</pallas_src>

<mosaic_0001>
module attributes {stable_mosaic.version = 11 : i64} {
  func.func @kernel(%arg0: i32, %arg1: i32, %arg2: memref<1x4x16x16xf32, #tpu.memory_space<vmem>>, %arg3: memref<8x16xf32, #tpu.memory_space<vmem>>, %arg4: memref<16x8xf32, #tpu.memory_space<vmem>>, %arg5: memref<4x16xf32, #tpu.memory_space<vmem>>, %arg6: memref<16x4xf32, #tpu.memory_space<vmem>>, %arg7: memref<1x4x8x8xf32, #tpu.memory_space<vmem>>, %arg8: memref<1x4x4x4xf32, #tpu.memory_space<vmem>>) attributes {dimension_semantics = [#tpu.dimension_semantics<parallel>, #tpu.dimension_semantics<parallel>], iteration_bounds = array<i64: 2, 1>, scalar_prefetch = 0 : i64, scratch_operands = 0 : i64, tpu.core_type = #tpu.core_type<tc>, window_params = [{transform_indices = @transform_0, window_bounds = array<i64: 1, 4, 16, 16>}, {pipeline_mode = #tpu.pipeline_mode<synchronous>, transform_indices = @transform_1, window_bounds = array<i64: 8, 16>}, {pipeline_mode = #tpu.pipeline_mode<synchronous>, transform_indices = @transform_2, window_bounds = array<i64: 16, 8>}, {pipeline_mode = #tpu.pipeline_mode<synchronous>, transform_indices = @transform_3, window_bounds = array<i64: 4, 16>}, {pipeline_mode = #tpu.pipeline_mode<synchronous>, transform_indices = @transform_4, window_bounds = array<i64: 16, 4>}, {transform_indices = @transform_5, window_bounds = array<i64: 1, 4, 8, 8>}, {transform_indices = @transform_6, window_bounds = array<i64: 1, 4, 4, 4>}]} {
    %c0 = arith.constant 0 : index
    %c0_0 = arith.constant 0 : index
    %c0_1 = arith.constant 0 : index
    %c0_2 = arith.constant 0 : index
    %0 = vector.load %arg2[%c0, %c0_0, %c0_1, %c0_2] : memref<1x4x16x16xf32, #tpu.memory_space<vmem>>, vector<1x4x16x16xf32>
    %1 = vector.shape_cast %0 : vector<1x4x16x16xf32> to vector<4x16x16xf32>
    %2 = vector.shape_cast %1 : vector<4x16x16xf32> to vector<64x16xf32>
    %c0_3 = arith.constant 0 : index
    %c0_4 = arith.constant 0 : index
    %3 = vector.load %arg4[%c0_3, %c0_4] : memref<16x8xf32, #tpu.memory_space<vmem>>, vector<16x8xf32>
    %cst = arith.constant dense<0.000000e+00> : vector<64x8xf32>
    %4 = tpu.matmul %2, %3, %cst {dimension_numbers = #tpu.dot_dimension_numbers<[1], [0], [0], [1], [0, 0, 1, 1], [], []>} : vector<64x16xf32>, vector<16x8xf32>, vector<64x8xf32> -> vector<64x8xf32>
    %5 = vector.shape_cast %4 : vector<64x8xf32> to vector<4x16x8xf32>
    %c0_5 = arith.constant 0 : index
    %c0_6 = arith.constant 0 : index
    %6 = vector.load %arg3[%c0_5, %c0_6] : memref<8x16xf32, #tpu.memory_space<vmem>>, vector<8x16xf32>
    %7 = vector.shape_cast %6 : vector<8x16xf32> to vector<1x8x16xf32>
    %8 = vector.broadcast %7 : vector<1x8x16xf32> to vector<4x8x16xf32>
    %cst_7 = arith.constant dense<0.000000e+00> : vector<4x8x8xf32>
    %9 = tpu.matmul %8, %5, %cst_7 {dimension_numbers = #tpu.dot_dimension_numbers<[2], [1], [1], [2], [0, 0, 0, 1, 1, 2], [0], [0]>} : vector<4x8x16xf32>, vector<4x16x8xf32>, vector<4x8x8xf32> -> vector<4x8x8xf32>
    %c0_8 = arith.constant 0 : index
    %c0_9 = arith.constant 0 : index
    %c0_10 = arith.constant 0 : index
    %c0_11 = arith.constant 0 : index
    %10 = vector.load %arg7[%c0_8, %c0_9, %c0_10, %c0_11] : memref<1x4x8x8xf32, #tpu.memory_space<vmem>>, vector<1x4x8x8xf32>
    %11 = vector.shape_cast %10 : vector<1x4x8x8xf32> to vector<4x8x8xf32>
    %12 = vector.shape_cast %9 : vector<4x8x8xf32> to vector<1x4x8x8xf32>
    tpu.vector_store %arg7[%c0_8, %c0_9, %c0_10, %c0_11], %12 {strides = array<i32>} : memref<1x4x8x8xf32, #tpu.memory_space<vmem>>, vector<1x4x8x8xf32>,
    %c0_12 = arith.constant 0 : index
    %c0_13 = arith.constant 0 : index
    %13 = vector.load %arg6[%c0_12, %c0_13] : memref<16x4xf32, #tpu.memory_space<vmem>>, vector<16x4xf32>
    %cst_14 = arith.constant dense<0.000000e+00> : vector<64x4xf32>
    %14 = tpu.matmul %2, %13, %cst_14 {dimension_numbers = #tpu.dot_dimension_numbers<[1], [0], [0], [1], [0, 0, 1, 1], [], []>} : vector<64x16xf32>, vector<16x4xf32>, vector<64x4xf32> -> vector<64x4xf32>
    %15 = vector.shape_cast %14 : vector<64x4xf32> to vector<4x16x4xf32>
    %c0_15 = arith.constant 0 : index
    %c0_16 = arith.constant 0 : index
    %16 = vector.load %arg5[%c0_15, %c0_16] : memref<4x16xf32, #tpu.memory_space<vmem>>, vector<4x16xf32>
    %17 = vector.shape_cast %16 : vector<4x16xf32> to vector<1x4x16xf32>
    %18 = vector.broadcast %17 : vector<1x4x16xf32> to vector<4x4x16xf32>
    %cst_17 = arith.constant dense<0.000000e+00> : vector<4x4x4xf32>
    %19 = tpu.matmul %18, %15, %cst_17 {dimension_numbers = #tpu.dot_dimension_numbers<[2], [1], [1], [2], [0, 0, 0, 1, 1, 2], [0], [0]>} : vector<4x4x16xf32>, vector<4x16x4xf32>, vector<4x4x4xf32> -> vector<4x4x4xf32>
    %c0_18 = arith.constant 0 : index
    %c0_19 = arith.constant 0 : index
    %c0_20 = arith.constant 0 : index
    %c0_21 = arith.constant 0 : index
    %20 = vector.load %arg8[%c0_18, %c0_19, %c0_20, %c0_21] : memref<1x4x4x4xf32, #tpu.memory_space<vmem>>, vector<1x4x4x4xf32>
    %21 = vector.shape_cast %20 : vector<1x4x4x4xf32> to vector<4x4x4xf32>
    %22 = vector.shape_cast %19 : vector<4x4x4xf32> to vector<1x4x4x4xf32>
    tpu.vector_store %arg8[%c0_18, %c0_19, %c0_20, %c0_21], %22 {strides = array<i32>} : memref<1x4x4x4xf32, #tpu.memory_space<vmem>>, vector<1x4x4x4xf32>,
    return
  }
  func.func @transform_0(%arg0: i32, %arg1: i32) -> (i32, i32, i32, i32) {
    %c0_i32 = arith.constant 0 : i32
    %c0_i32_0 = arith.constant 0 : i32
    %c0_i32_1 = arith.constant 0 : i32
    return %arg0, %arg1, %c0_i32, %c0_i32_0 : i32, i32, i32, i32
  }
  func.func @transform_1(%arg0: i32, %arg1: i32) -> (i32, i32) {
    %c0_i32 = arith.constant 0 : i32
    %c0_i32_0 = arith.constant 0 : i32
    %c0_i32_1 = arith.constant 0 : i32
    return %c0_i32, %c0_i32_0 : i32, i32
  }
  func.func @transform_2(%arg0: i32, %arg1: i32) -> (i32, i32) {
    %c0_i32 = arith.constant 0 : i32
    %c0_i32_0 = arith.constant 0 : i32
    %c0_i32_1 = arith.constant 0 : i32
    return %c0_i32, %c0_i32_0 : i32, i32
  }
  func.func @transform_3(%arg0: i32, %arg1: i32) -> (i32, i32) {
    %c0_i32 = arith.constant 0 : i32
    %c0_i32_0 = arith.constant 0 : i32
    %c0_i32_1 = arith.constant 0 : i32
    return %c0_i32, %c0_i32_0 : i32, i32
  }
  func.func @transform_4(%arg0: i32, %arg1: i32) -> (i32, i32) {
    %c0_i32 = arith.constant 0 : i32
    %c0_i32_0 = arith.constant 0 : i32
    %c0_i32_1 = arith.constant 0 : i32
    return %c0_i32, %c0_i32_0 : i32, i32
  }
  func.func @transform_5(%arg0: i32, %arg1: i32) -> (i32, i32, i32, i32) {
    %c0_i32 = arith.constant 0 : i32
    %c0_i32_0 = arith.constant 0 : i32
    %c0_i32_1 = arith.constant 0 : i32
    return %arg0, %arg1, %c0_i32, %c0_i32_0 : i32, i32, i32, i32
  }
  func.func @transform_6(%arg0: i32, %arg1: i32) -> (i32, i32, i32, i32) {
    %c0_i32 = arith.constant 0 : i32
    %c0_i32_0 = arith.constant 0 : i32
    %c0_i32_1 = arith.constant 0 : i32
    return %arg0, %arg1, %c0_i32, %c0_i32_0 : i32, i32, i32, i32
  }
}

</mosaic_0001>

<llo_original>
// kernel: tpu_custom_call.1
$region0: #{tpu_custom_call.1}
  #allocation0 [shape = 'u32[]', space=smem, size = 0x4, offset = 0x4, fixed_abs, tag = 'smem constant byte address 0x4 - core index']
  #allocation1 [shape = 'u32[144,128]{1,0:T(1,128)}', space=vmem, size = 0x12000, scoped, tag = 'internal scratch']
  %s0 = inlined_call_operand.hbm [shape: f32[2,4,16,16], index: 0, kind: input, shape index: {}]
  %s1 = inlined_call_operand.vmem [shape: f32[8,16], index: 1, kind: input, shape index: {}]
  %s2 = inlined_call_operand.vmem [shape: f32[16,8], index: 2, kind: input, shape index: {}]
  %s3 = inlined_call_operand.vmem [shape: f32[4,16], index: 3, kind: input, shape index: {}]
  %s4 = inlined_call_operand.vmem [shape: f32[16,4], index: 4, kind: input, shape index: {}]
  %s5 = inlined_call_operand.hbm [shape: f32[2,4,8,8], index: 5, kind: output, shape index: {0}]
  %s6 = inlined_call_operand.hbm [shape: f32[2,4,4,4], index: 6, kind: output, shape index: {1}]
  %7 = xla_tuple %s5, %s6
  %s8 = sld [smem:[#allocation0]]
  $region65: #{tpu_custom_call.1} parent=0
    _
  %s10 = ssub.s32 1, %s8
  %s11 = scalar_select 0, %s10, %s8
  $region1: #{tpu_custom_call.1} parent=0
    #allocation2 [shape = 'u8[65536]{0}', space=vmem, size = 0x10000, scoped, tag = 'input window, operand 0']
    #allocation3 [shape = 's32[2]{0}', space=sflag, size = 0x8, scoped, tag = 'scoped memory for tpu_custom_call.1']
    #allocation4 [shape = 's32[2]{0}', space=sflag, size = 0x8, scoped, tag = 'scoped memory for tpu_custom_call.1']
    #allocation5 [shape = 'u8[32768]{0}', space=vmem, size = 0x8000, scoped, tag = 'output window, operand 0']
    #allocation6 [shape = 'u8[16384]{0}', space=vmem, size = 0x4000, scoped, tag = 'output window, operand 1']
    #allocation7 [shape = 's32[2]{0}', space=sflag, size = 0x8, scoped, tag = 'scoped memory for tpu_custom_call.1']
    %12 = vsyncpa [#allocation3], 0
    %s13 = scalar_lea.sflag [#allocation3], 1
    %14 = vsyncpa %s13, 0
    %15 = vsyncpa [#allocation4], 0
    %s16 = scalar_lea.sflag [#allocation4], 1
    %17 = vsyncpa %s16, 0
    %18 = vsyncpa [#allocation7], 0
    %s19 = scalar_lea.sflag [#allocation7], 1
    %20 = vsyncpa %s19, 0
    loop: start=0, step=1, limit=4
    $region2: #{tpu_custom_call.1} parent=1 // loop_pre_header
      _
    $region3: #{tpu_custom_call.1} parent=1 // loop_header
      %s22 = sphi 0, %s26
      %p23 = scmp.ge.s32.totalorder %s22, 4
      %s29 = sphi 0, %s41
      %s30 = sphi 0, %s37
      %s31 = sphi 0, %s29
      %s32 = sphi 0, %s30
      %s33 = sphi 0, %s31
      %s34 = sphi 0, %s32
      %s46 = sphi 0, %s48
      %s49 = sphi 0, %s46
      %s50 = sphi 0, %s49
      %s66 = sphi 0, %s50
      %s70 = sphi 0, %s70
      %s72 = sphi 0, %s70
      %s73 = sphi 0, %s72
      %s87 = sphi 0, %s73
      %s91 = sphi 0, %s91
      %s93 = sphi 0, %s91
      %s94 = sphi 0, %s93
      %s108 = sphi 0, %s94
      %s112 = sphi 0, %s112
      %s114 = sphi 0, %s112
      %s115 = sphi 0, %s114
      %s129 = sphi 0, %s115
      %s133 = sphi 0, %s133
      %s135 = sphi 0, %s133
      %s136 = sphi 0, %s135
      %s150 = sphi 0, %s136
      %s158 = sphi 0, %s160
      %s161 = sphi 0, %s158
      %s162 = sphi 0, %s161
      %s178 = sphi 0, %s162
      %s186 = sphi 0, %s188
      %s189 = sphi 0, %s186
      %s190 = sphi 0, %s189
      %s206 = sphi 0, %s190
    $region4: #{tpu_custom_call.1} parent=1 // loop_header_branch
      %25 = sbr.rel (%p23) target = $region8
    $region5: #{tpu_custom_call.1} parent=1 // loop_body
      %s27 = ssub.s32 %s22, 1
      %s28 = ssub.s32 %s22, 2
      %s35 = sadd.s32 1, %s30
      %p36 = scmp.ge.s32.totalorder %s35, 1
      %s37 = scalar_select %p36, 0, %s35
      %s38 = sadd.s32 1, %s29
      %s39 = scalar_select %p36, %s38, %s29
      %p40 = scmp.ge.s32.totalorder %s39, 2
      %s41 = scalar_select %p40, 0, %s39
      %s42 = ssub.s32 %s29, %s41
      %s43 = ssub.s32 %s30, %s37
      %s44 = sor.u32 %s42, %s43
      %p45 = scmp.eq.s32.totalorder %s44, 0
      %s47 = sadd.s32 %s46, 1
      %s48 = scalar_select %p45, %s46, %s47
      %p51 = pneg %p45
      %p52 = scmp.eq.s32.totalorder %s22, 1
      %p53 = por %p51, %p52
      %p54 = scmp.ne.s32.totalorder %s46, %s49
      %p55 = scmp.eq.s32.totalorder %s22, 0
      %p56 = por %p54, %p55
      %p57 = scmp.ne.s32.totalorder %s46, %s49
      %p58 = scmp.eq.s32.totalorder %s27, 1
      %p59 = por %p57, %p58
      %p60 = scmp.ne.s32.totalorder %s49, %s50
      %p61 = scmp.eq.s32.totalorder %s27, 0
      %p62 = por %p60, %p61
      %p63 = scmp.ne.s32.totalorder %s49, %s50
      %p64 = scmp.eq.s32.totalorder %s28, 1
      %p65 = por %p63, %p64
      %p67 = scmp.ne.s32.totalorder %s50, %s66
      %p68 = scmp.eq.s32.totalorder %s28, 0
      %p69 = por %p67, %p68
      %s71 = sadd.s32 %s70, 1
      %p74 = scmp.eq.s32.totalorder %s22, 1
      %p75 = scmp.ne.s32.totalorder %s70, %s72
      %p76 = scmp.eq.s32.totalorder %s22, 0
      %p77 = por %p75, %p76
      %p78 = scmp.ne.s32.totalorder %s70, %s72
      %p79 = scmp.eq.s32.totalorder %s27, 1
      %p80 = por %p78, %p79
      %p81 = scmp.ne.s32.totalorder %s72, %s73
      %p82 = scmp.eq.s32.totalorder %s27, 0
      %p83 = por %p81, %p82
      %p84 = scmp.ne.s32.totalorder %s72, %s73
      %p85 = scmp.eq.s32.totalorder %s28, 1
      %p86 = por %p84, %p85
      %p88 = scmp.ne.s32.totalorder %s73, %s87
      %p89 = scmp.eq.s32.totalorder %s28, 0
      %p90 = por %p88, %p89
      %s92 = sadd.s32 %s91, 1
      %p95 = scmp.eq.s32.totalorder %s22, 1
      %p96 = scmp.ne.s32.totalorder %s91, %s93
      %p97 = scmp.eq.s32.totalorder %s22, 0
      %p98 = por %p96, %p97
      %p99 = scmp.ne.s32.totalorder %s91, %s93
      %p100 = scmp.eq.s32.totalorder %s27, 1
      %p101 = por %p99, %p100
      %p102 = scmp.ne.s32.totalorder %s93, %s94
      %p103 = scmp.eq.s32.totalorder %s27, 0
      %p104 = por %p102, %p103
      %p105 = scmp.ne.s32.totalorder %s93, %s94
      %p106 = scmp.eq.s32.totalorder %s28, 1
      %p107 = por %p105, %p106
      %p109 = scmp.ne.s32.totalorder %s94, %s108
      %p110 = scmp.eq.s32.totalorder %s28, 0
      %p111 = por %p109, %p110
      %s113 = sadd.s32 %s112, 1
      %p116 = scmp.eq.s32.totalorder %s22, 1
      %p117 = scmp.ne.s32.totalorder %s112, %s114
      %p118 = scmp.eq.s32.totalorder %s22, 0
      %p119 = por %p117, %p118
      %p120 = scmp.ne.s32.totalorder %s112, %s114
      %p121 = scmp.eq.s32.totalorder %s27, 1
      %p122 = por %p120, %p121
      %p123 = scmp.ne.s32.totalorder %s114, %s115
      %p124 = scmp.eq.s32.totalorder %s27, 0
      %p125 = por %p123, %p124
      %p126 = scmp.ne.s32.totalorder %s114, %s115
      %p127 = scmp.eq.s32.totalorder %s28, 1
      %p128 = por %p126, %p127
      %p130 = scmp.ne.s32.totalorder %s115, %s129
      %p131 = scmp.eq.s32.totalorder %s28, 0
      %p132 = por %p130, %p131
      %s134 = sadd.s32 %s133, 1
      %p137 = scmp.eq.s32.totalorder %s22, 1
      %p138 = scmp.ne.s32.totalorder %s133, %s135
      %p139 = scmp.eq.s32.totalorder %s22, 0
      %p140 = por %p138, %p139
      %p141 = scmp.ne.s32.totalorder %s133, %s135
      %p142 = scmp.eq.s32.totalorder %s27, 1
      %p143 = por %p141, %p142
      %p144 = scmp.ne.s32.totalorder %s135, %s136
      %p145 = scmp.eq.s32.totalorder %s27, 0
      %p146 = por %p144, %p145
      %p147 = scmp.ne.s32.totalorder %s135, %s136
      %p148 = scmp.eq.s32.totalorder %s28, 1
      %p149 = por %p147, %p148
      %p151 = scmp.ne.s32.totalorder %s136, %s150
      %p152 = scmp.eq.s32.totalorder %s28, 0
      %p153 = por %p151, %p152
      %s154 = ssub.s32 %s29, %s41
      %s155 = ssub.s32 %s30, %s37
      %s156 = sor.u32 %s154, %s155
      %p157 = scmp.eq.s32.totalorder %s156, 0
      %s159 = sadd.s32 %s158, 1
      %s160 = scalar_select %p157, %s158, %s159
      %p163 = pneg %p157
      %p164 = scmp.eq.s32.totalorder %s22, 1
      %p165 = por %p163, %p164
      %p166 = scmp.ne.s32.totalorder %s158, %s161
      %p167 = scmp.eq.s32.totalorder %s22, 0
      %p168 = por %p166, %p167
      %p169 = scmp.ne.s32.totalorder %s158, %s161
      %p170 = scmp.eq.s32.totalorder %s27, 1
      %p171 = por %p169, %p170
      %p172 = scmp.ne.s32.totalorder %s161, %s162
      %p173 = scmp.eq.s32.totalorder %s27, 0
      %p174 = por %p172, %p173
      %p175 = scmp.ne.s32.totalorder %s161, %s162
      %p176 = scmp.eq.s32.totalorder %s28, 1
      %p177 = por %p175, %p176
      %p179 = scmp.ne.s32.totalorder %s162, %s178
      %p180 = scmp.eq.s32.totalorder %s28, 0
      %p181 = por %p179, %p180
      %s182 = ssub.s32 %s29, %s41
      %s183 = ssub.s32 %s30, %s37
      %s184 = sor.u32 %s182, %s183
      %p185 = scmp.eq.s32.totalorder %s184, 0
      %s187 = sadd.s32 %s186, 1
      %s188 = scalar_select %p185, %s186, %s187
      %p191 = pneg %p185
      %p192 = scmp.eq.s32.totalorder %s22, 1
      %p193 = por %p191, %p192
      %p194 = scmp.ne.s32.totalorder %s186, %s189
      %p195 = scmp.eq.s32.totalorder %s22, 0
      %p196 = por %p194, %p195
      %p197 = scmp.ne.s32.totalorder %s186, %s189
      %p198 = scmp.eq.s32.totalorder %s27, 1
      %p199 = por %p197, %p198
      %p200 = scmp.ne.s32.totalorder %s189, %s190
      %p201 = scmp.eq.s32.totalorder %s27, 0
      %p202 = por %p200, %p201
      %p203 = scmp.ne.s32.totalorder %s189, %s190
      %p204 = scmp.eq.s32.totalorder %s28, 1
      %p205 = por %p203, %p204
      %p207 = scmp.ne.s32.totalorder %s190, %s206
      %p208 = scmp.eq.s32.totalorder %s28, 0
      %p209 = por %p207, %p208
      %p210 = scmp.le.s32.totalorder 1, %s22
      %p211 = scmp.lt.s32.totalorder %s22, 3
      %p212 = pnand %p210, %p211
      %p213 = pneg %p212
      // Predicated region
      $region9: #{tpu_custom_call.1} parent=5 // pred_check
        _
      $region10: #{tpu_custom_call.1} parent=5 // pred_check_branch
        %215 = sbr.rel (%p212) target = $region12
      $region11: #{tpu_custom_call.1} parent=5 // pred_region
        %s216 = ssub.s32 %s22, 1
        // Predicated region
        $region13: #{tpu_custom_call.1} parent=11 // pred_check
          %p217 = pneg %p83
        $region14: #{tpu_custom_call.1} parent=11 // pred_check_branch
          %219 = sbr.rel (%p217) target = $region16
        $region15: #{tpu_custom_call.1} parent=11 // pred_region
          _
        $region16: #{tpu_custom_call.1} parent=11 // pred_fallthru
          _
        // Predicated region
        $region17: #{tpu_custom_call.1} parent=11 // pred_check
          %p220 = pneg %p104
        $region18: #{tpu_custom_call.1} parent=11 // pred_check_branch
          %222 = sbr.rel (%p220) target = $region20
        $region19: #{tpu_custom_call.1} parent=11 // pred_region
          _
        $region20: #{tpu_custom_call.1} parent=11 // pred_fallthru
          _
        // Predicated region
        $region21: #{tpu_custom_call.1} parent=11 // pred_check
          %p223 = pneg %p125
        $region22: #{tpu_custom_call.1} parent=11 // pred_check_branch
          %225 = sbr.rel (%p223) target = $region24
        $region23: #{tpu_custom_call.1} parent=11 // pred_region
          _
        $region24: #{tpu_custom_call.1} parent=11 // pred_fallthru
          _
        // Predicated region
        $region25: #{tpu_custom_call.1} parent=11 // pred_check
          %p226 = pneg %p146
        $region26: #{tpu_custom_call.1} parent=11 // pred_check_branch
          %228 = sbr.rel (%p226) target = $region28
        $region27: #{tpu_custom_call.1} parent=11 // pred_region
          _
        $region28: #{tpu_custom_call.1} parent=11 // pred_fallthru
          _
      $region12: #{tpu_custom_call.1} parent=5 // pred_fallthru
        _
      %p229 = scmp.lt.s32.totalorder %s22, 2
      // Predicated region
      $region29: #{tpu_custom_call.1} parent=5 // pred_check
        %p230 = pneg %p229
      $region30: #{tpu_custom_call.1} parent=5 // pred_check_branch
        %232 = sbr.rel (%p230) target = $region32
      $region31: #{tpu_custom_call.1} parent=5 // pred_region
        // Predicated region
        $region33: #{tpu_custom_call.1} parent=31 // pred_check
          %p233 = pneg %p56
        $region34: #{tpu_custom_call.1} parent=31 // pred_check_branch
          %235 = sbr.rel (%p233) target = $region36
        $region35: #{tpu_custom_call.1} parent=31 // pred_region
          %s236 = sand.u32 %s46, 1
          %s237 = scalar_lea.sflag [#allocation3], %s236
          %s238 = sand.u32 %s46, 1
          %s239 = smul.addr %s238, 64
          %s240 = scalar_lea.vmem [#allocation2], %s239
          %s241 = smul.u32 4, %s30
          %s243 = ssub.s32 1024, 1024
          %244 = vsyncadd %s237, %s243
          %s245 = smul.addr %s241, 2
          %s246 = smul.addr %s29, 8
          %s247 = sadd.s32 %s245, %s246
          %s248 = smul.addr %s247, 128
          %s249 = scalar_lea.hbm %s0, %s248
          %s250 = sshll.u32 %s240, 4
          %s251 = int_to_ptr.vmem [resolvable:$true] %s250
          %256 = dma.hbm_to_vmem [thread:$0]  %s249, 1024, %s251, %s237, 128, 128, 8
        $region36: #{tpu_custom_call.1} parent=31 // pred_fallthru
          _
      $region32: #{tpu_custom_call.1} parent=5 // pred_fallthru
        _
      %p257 = scmp.le.s32.totalorder 1, %s22
      %p258 = scmp.lt.s32.totalorder %s22, 3
      %p259 = pnand %p257, %p258
      %p260 = pneg %p259
      // Predicated region
      $region37: #{tpu_custom_call.1} parent=5 // pred_check
        _
      $region38: #{tpu_custom_call.1} parent=5 // pred_check_branch
        %262 = sbr.rel (%p259) target = $region40
      $region39: #{tpu_custom_call.1} parent=5 // pred_region
        %s263 = ssub.s32 %s22, 1
        %s264 = sand.u32 %s49, 1
        %s265 = scalar_lea.sflag [#allocation3], %s264
        %s266 = sand.u32 %s49, 1
        %s267 = smul.addr %s266, 64
        %s268 = scalar_lea.vmem [#allocation2], %s267
        // Predicated region
        $region41: #{tpu_custom_call.1} parent=39 // pred_check
          %p269 = pneg %p62
        $region42: #{tpu_custom_call.1} parent=39 // pred_check_branch
          %271 = sbr.rel (%p269) target = $region44
        $region43: #{tpu_custom_call.1} parent=39 // pred_region
          %272 = dma.done %s265, 1024
        $region44: #{tpu_custom_call.1} parent=39 // pred_fallthru
          _
        %s273 = sand.u32 %s49, 1
        %s274 = scalar_lea.sflag [#allocation3], %s273
        %s275 = sand.u32 %s49, 1
        %s276 = smul.addr %s275, 64
        %s277 = scalar_lea.vmem [#allocation2], %s276
        %p278 = pneg %p62
        %p279 = pneg %p59
        %p280 = pneg %p83
        %p281 = pneg %p80
        %p282 = pneg %p104
        %p283 = pneg %p101
        %p284 = pneg %p125
        %p285 = pneg %p122
        %p286 = pneg %p146
        %p287 = pneg %p143
        %p288 = pneg %p174
        %p289 = pneg %p171
        %s290 = sand.u32 %s161, 1
        %s291 = scalar_lea.sflag [#allocation4], %s290
        %s292 = sand.u32 %s161, 1
        %s293 = smul.addr %s292, 32
        %s294 = scalar_lea.vmem [#allocation5], %s293
        %p295 = pneg %p202
        %p296 = pneg %p199
        %s297 = sand.u32 %s189, 1
        %s298 = scalar_lea.sflag [#allocation7], %s297
        %s299 = sand.u32 %s189, 1
        %s300 = smul.addr %s299, 16
        %s301 = scalar_lea.vmem [#allocation6], %s300
        %s302 = smul.u32 4, %s32
        %s303 = smul.u32 4, %s32
        %s304 = smul.u32 4, %s32
        %v305 = vld [vmem:[%s268] sm:$0xff]
        %v306 = vld [vmem:[%s268 + $0x8] sm:$0xff]
        %v307 = vld [vmem:[%s268 + $0x10] sm:$0xff]
        %v308 = vld [vmem:[%s268 + $0x18] sm:$0xff]
        %v309 = vld [vmem:[%s268 + $0x20] sm:$0xff]
        %v310 = vld [vmem:[%s268 + $0x28] sm:$0xff]
        %v311 = vld [vmem:[%s268 + $0x30] sm:$0xff]
        %v312 = vld [vmem:[%s268 + $0x38] sm:$0xff]
        %v313 = vld [vmem:[%s2] sm:$0xff]
        %v314 = vld [vmem:[%s2 + $0x8] sm:$0xff]
        %vm315 = vcmask 130048
        %v317 = vsel %vm315, %v305, 0
        %v320 = vsel %vm315, %v306, 0
        %v323 = vsel %vm315, %v307, 0
        %v326 = vsel %vm315, %v308, 0
        %v329 = vsel %vm315, %v309, 0
        %v332 = vsel %vm315, %v310, 0
        %v335 = vsel %vm315, %v311, 0
        %v338 = vsel %vm315, %v312, 0
        %340 = vmatprep.subr.mxu0 0.0
        %341 = vmatpush1.msra.mxu0 0.0
        %342 = vmatprep.subr.mxu0 0.0
        %343 = vmatpush1.msra.mxu0 0.0
        %344 = vmatprep.subr.mxu0 0.0
        %345 = vmatpush1.msra.mxu0 0.0
        %346 = vmatprep.subr.mxu0 0.0
        %347 = vmatpush1.msra.mxu0 0.0
        %348 = vmatprep.subr.mxu0 0.0
        %349 = vmatpush1.msra.mxu0 0.0
        %350 = vmatprep.subr.mxu0 0.0
        %351 = vmatpush1.msra.mxu0 0.0
        %352 = vmatprep.subr.mxu0 0.0
        %353 = vmatpush1.msra.mxu0 0.0
        %354 = vmatprep.subr.mxu0 0.0
        %355 = vmatpush1.msra.mxu0 0.0
        %356 = vmatprep.subr.mxu0 0.0
        %357 = vmatpush1.msra.mxu0 0.0
        %358 = vmatprep.subr.mxu0 0.0
        %359 = vmatpush1.msra.mxu0 0.0
        %360 = vmatprep.subr.mxu0 0.0
        %361 = vmatpush1.msra.mxu0 0.0
        %362 = vmatprep.subr.mxu0 0.0
        %363 = vmatpush1.msra.mxu0 0.0
        %364 = vmatprep.subr.mxu0 0.0
        %365 = vmatpush1.msra.mxu0 0.0
        %366 = vmatprep.subr.mxu0 0.0
        %367 = vmatpush1.msra.mxu0 0.0
        %368 = vmatprep.subr.mxu0 0.0
        %369 = vmatpush1.msra.mxu0 %v314
        %370 = vmatprep.subr.mxu0 0.0
        %371 = vmatpush1.msra.mxu0 %v313
        %372 = vmatprep.subr.mxu0 0.0
        %373 = vmatpush2.msra.mxu0 0.0
        %374 = vmatprep.subr.mxu0 0.0
        %375 = vmatpush2.msra.mxu0 0.0
        %376 = vmatprep.subr.mxu0 0.0
        %377 = vmatpush2.msra.mxu0 0.0
        %378 = vmatprep.subr.mxu0 0.0
        %379 = vmatpush2.msra.mxu0 0.0
        %380 = vmatprep.subr.mxu0 0.0
        %381 = vmatpush2.msra.mxu0 0.0
        %382 = vmatprep.subr.mxu0 0.0
        %383 = vmatpush2.msra.mxu0 0.0
        %384 = vmatprep.subr.mxu0 0.0
        %385 = vmatpush2.msra.mxu0 0.0
        %386 = vmatprep.subr.mxu0 0.0
        %387 = vmatpush2.msra.mxu0 0.0
        %388 = vmatprep.subr.mxu0 0.0
        %389 = vmatpush2.msra.mxu0 0.0
        %390 = vmatprep.subr.mxu0 0.0
        %391 = vmatpush2.msra.mxu0 0.0
        %392 = vmatprep.subr.mxu0 0.0
        %393 = vmatpush2.msra.mxu0 0.0
        %394 = vmatprep.subr.mxu0 0.0
        %395 = vmatpush2.msra.mxu0 0.0
        %396 = vmatprep.subr.mxu0 0.0
        %397 = vmatpush2.msra.mxu0 0.0
        %398 = vmatprep.subr.mxu0 0.0
        %399 = vmatpush2.msra.mxu0 0.0
        %400 = vmatprep.subr.mxu0 0.0
        %401 = vmatpush2.msra.mxu0 0.0
        %402 = vmatprep.subr.mxu0 0.0
        %403 = vmatpush2.msra.mxu0 0.0
        %404 = vmatprep.mubr.f32.mxu0 0.0
        %405 = vmatmul.mubr.f32.gmra.mxu0 %v317
        %v406 = vpop.f32.mrf.mxu0
        %v407 = vadd.f32 0.0, %v406
        %v408 = vpop.f32.mrf.mxu0
        %409 = vmatprep.mubr.f32.mxu0 0.0
        %410 = vmatmul.mubr.f32.gmra.mxu0 %v320
        %v411 = vpop.f32.mrf.mxu0
        %v412 = vadd.f32 0.0, %v411
        %v413 = vpop.f32.mrf.mxu0
        %414 = vmatprep.mubr.f32.mxu0 0.0
        %415 = vmatmul.mubr.f32.gmra.mxu0 %v323
        %v416 = vpop.f32.mrf.mxu0
        %v417 = vadd.f32 0.0, %v416
        %v418 = vpop.f32.mrf.mxu0
        %419 = vmatprep.mubr.f32.mxu0 0.0
        %420 = vmatmul.mubr.f32.gmra.mxu0 %v326
        %v421 = vpop.f32.mrf.mxu0
        %v422 = vadd.f32 0.0, %v421
        %v423 = vpop.f32.mrf.mxu0
        %424 = vmatprep.mubr.f32.mxu0 0.0
        %425 = vmatmul.mubr.f32.gmra.mxu0 %v329
        %v426 = vpop.f32.mrf.mxu0
        %v427 = vadd.f32 0.0, %v426
        %v428 = vpop.f32.mrf.mxu0
        %429 = vmatprep.mubr.f32.mxu0 0.0
        %430 = vmatmul.mubr.f32.gmra.mxu0 %v332
        %v431 = vpop.f32.mrf.mxu0
        %v432 = vadd.f32 0.0, %v431
        %v433 = vpop.f32.mrf.mxu0
        %434 = vmatprep.mubr.f32.mxu0 0.0
        %435 = vmatmul.mubr.f32.gmra.mxu0 %v335
        %v436 = vpop.f32.mrf.mxu0
        %v437 = vadd.f32 0.0, %v436
        %v438 = vpop.f32.mrf.mxu0
        %439 = vmatprep.mubr.f32.mxu0 0.0
        %440 = vmatmul.mubr.f32.gmra.mxu0 %v338
        %v441 = vpop.f32.mrf.mxu0
        %v442 = vadd.f32 0.0, %v441
        %v443 = vpop.f32.mrf.mxu0
        %444 = vdwg.mxu0
        %v445 = vld [vmem:[%s1] sm:$0xff]
        %v447 = vsel %vm315, %v445, 0
        %449 = vmatprep.subr.mxu0 0.0
        %450 = vmatpush1.msra.mxu0 0.0
        %451 = vmatprep.subr.mxu0 0.0
        %452 = vmatpush1.msra.mxu0 0.0
        %453 = vmatprep.subr.mxu0 0.0
        %454 = vmatpush1.msra.mxu0 0.0
        %455 = vmatprep.subr.mxu0 0.0
        %456 = vmatpush1.msra.mxu0 0.0
        %457 = vmatprep.subr.mxu0 0.0
        %458 = vmatpush1.msra.mxu0 0.0
        %459 = vmatprep.subr.mxu0 0.0
        %460 = vmatpush1.msra.mxu0 0.0
        %461 = vmatprep.subr.mxu0 0.0
        %462 = vmatpush1.msra.mxu0 0.0
        %463 = vmatprep.subr.mxu0 0.0
        %464 = vmatpush1.msra.mxu0 0.0
        %465 = vmatprep.subr.mxu0 0.0
        %466 = vmatpush1.msra.mxu0 0.0
        %467 = vmatprep.subr.mxu0 0.0
        %468 = vmatpush1.msra.mxu0 0.0
        %469 = vmatprep.subr.mxu0 0.0
        %470 = vmatpush1.msra.mxu0 0.0
        %471 = vmatprep.subr.mxu0 0.0
        %472 = vmatpush1.msra.mxu0 0.0
        %473 = vmatprep.subr.mxu0 0.0
        %474 = vmatpush1.msra.mxu0 0.0
        %475 = vmatprep.subr.mxu0 0.0
        %476 = vmatpush1.msra.mxu0 0.0
        %477 = vmatprep.subr.mxu0 0.0
        %478 = vmatpush1.msra.mxu0 %v412
        %479 = vmatprep.subr.mxu0 0.0
        %480 = vmatpush1.msra.mxu0 %v407
        %481 = vmatprep.subr.mxu0 0.0
        %482 = vmatpush2.msra.mxu0 0.0
        %483 = vmatprep.subr.mxu0 0.0
        %484 = vmatpush2.msra.mxu0 0.0
        %485 = vmatprep.subr.mxu0 0.0
        %486 = vmatpush2.msra.mxu0 0.0
        %487 = vmatprep.subr.mxu0 0.0
        %488 = vmatpush2.msra.mxu0 0.0
        %489 = vmatprep.subr.mxu0 0.0
        %490 = vmatpush2.msra.mxu0 0.0
        %491 = vmatprep.subr.mxu0 0.0
        %492 = vmatpush2.msra.mxu0 0.0
        %493 = vmatprep.subr.mxu0 0.0
        %494 = vmatpush2.msra.mxu0 0.0
        %495 = vmatprep.subr.mxu0 0.0
        %496 = vmatpush2.msra.mxu0 0.0
        %497 = vmatprep.subr.mxu0 0.0
        %498 = vmatpush2.msra.mxu0 0.0
        %499 = vmatprep.subr.mxu0 0.0
        %500 = vmatpush2.msra.mxu0 0.0
        %501 = vmatprep.subr.mxu0 0.0
        %502 = vmatpush2.msra.mxu0 0.0
        %503 = vmatprep.subr.mxu0 0.0
        %504 = vmatpush2.msra.mxu0 0.0
        %505 = vmatprep.subr.mxu0 0.0
        %506 = vmatpush2.msra.mxu0 0.0
        %507 = vmatprep.subr.mxu0 0.0
        %508 = vmatpush2.msra.mxu0 0.0
        %509 = vmatprep.subr.mxu0 0.0
        %510 = vmatpush2.msra.mxu0 0.0
        %511 = vmatprep.subr.mxu0 0.0
        %512 = vmatpush2.msra.mxu0 0.0
        %513 = vmatprep.mubr.f32.mxu0 0.0
        %514 = vmatmul.mubr.f32.gmra.mxu0 %v447
        %v515 = vpop.f32.mrf.mxu0
        %v516 = vadd.f32 0.0, %v515
        %v517 = vpop.f32.mrf.mxu0
        %518 = vdwg.mxu0
        %519 = vmatprep.subr.mxu0 0.0
        %520 = vmatpush1.msra.mxu0 0.0
        %521 = vmatprep.subr.mxu0 0.0
        %522 = vmatpush1.msra.mxu0 0.0
        %523 = vmatprep.subr.mxu0 0.0
        %524 = vmatpush1.msra.mxu0 0.0
        %525 = vmatprep.subr.mxu0 0.0
        %526 = vmatpush1.msra.mxu0 0.0
        %527 = vmatprep.subr.mxu0 0.0
        %528 = vmatpush1.msra.mxu0 0.0
        %529 = vmatprep.subr.mxu0 0.0
        %530 = vmatpush1.msra.mxu0 0.0
        %531 = vmatprep.subr.mxu0 0.0
        %532 = vmatpush1.msra.mxu0 0.0
        %533 = vmatprep.subr.mxu0 0.0
        %534 = vmatpush1.msra.mxu0 0.0
        %535 = vmatprep.subr.mxu0 0.0
        %536 = vmatpush1.msra.mxu0 0.0
        %537 = vmatprep.subr.mxu0 0.0
        %538 = vmatpush1.msra.mxu0 0.0
        %539 = vmatprep.subr.mxu0 0.0
        %540 = vmatpush1.msra.mxu0 0.0
        %541 = vmatprep.subr.mxu0 0.0
        %542 = vmatpush1.msra.mxu0 0.0
        %543 = vmatprep.subr.mxu0 0.0
        %544 = vmatpush1.msra.mxu0 0.0
        %545 = vmatprep.subr.mxu0 0.0
        %546 = vmatpush1.msra.mxu0 0.0
        %547 = vmatprep.subr.mxu0 0.0
        %548 = vmatpush1.msra.mxu0 %v422
        %549 = vmatprep.subr.mxu0 0.0
        %550 = vmatpush1.msra.mxu0 %v417
        %551 = vmatprep.subr.mxu0 0.0
        %552 = vmatpush2.msra.mxu0 0.0
        %553 = vmatprep.subr.mxu0 0.0
        %554 = vmatpush2.msra.mxu0 0.0
        %555 = vmatprep.subr.mxu0 0.0
        %556 = vmatpush2.msra.mxu0 0.0
        %557 = vmatprep.subr.mxu0 0.0
        %558 = vmatpush2.msra.mxu0 0.0
        %559 = vmatprep.subr.mxu0 0.0
        %560 = vmatpush2.msra.mxu0 0.0
        %561 = vmatprep.subr.mxu0 0.0
        %562 = vmatpush2.msra.mxu0 0.0
        %563 = vmatprep.subr.mxu0 0.0
        %564 = vmatpush2.msra.mxu0 0.0
        %565 = vmatprep.subr.mxu0 0.0
        %566 = vmatpush2.msra.mxu0 0.0
        %567 = vmatprep.subr.mxu0 0.0
        %568 = vmatpush2.msra.mxu0 0.0
        %569 = vmatprep.subr.mxu0 0.0
        %570 = vmatpush2.msra.mxu0 0.0
        %571 = vmatprep.subr.mxu0 0.0
        %572 = vmatpush2.msra.mxu0 0.0
        %573 = vmatprep.subr.mxu0 0.0
        %574 = vmatpush2.msra.mxu0 0.0
        %575 = vmatprep.subr.mxu0 0.0
        %576 = vmatpush2.msra.mxu0 0.0
        %577 = vmatprep.subr.mxu0 0.0
        %578 = vmatpush2.msra.mxu0 0.0
        %579 = vmatprep.subr.mxu0 0.0
        %580 = vmatpush2.msra.mxu0 0.0
        %581 = vmatprep.subr.mxu0 0.0
        %582 = vmatpush2.msra.mxu0 0.0
        %583 = vmatprep.mubr.f32.mxu0 0.0
        %584 = vmatmul.mubr.f32.gmra.mxu0 %v447
        %v585 = vpop.f32.mrf.mxu0
        %v586 = vadd.f32 0.0, %v585
        %v587 = vpop.f32.mrf.mxu0
        %588 = vdwg.mxu0
        %589 = vmatprep.subr.mxu0 0.0
        %590 = vmatpush1.msra.mxu0 0.0
        %591 = vmatprep.subr.mxu0 0.0
        %592 = vmatpush1.msra.mxu0 0.0
        %593 = vmatprep.subr.mxu0 0.0
        %594 = vmatpush1.msra.mxu0 0.0
        %595 = vmatprep.subr.mxu0 0.0
        %596 = vmatpush1.msra.mxu0 0.0
        %597 = vmatprep.subr.mxu0 0.0
        %598 = vmatpush1.msra.mxu0 0.0
        %599 = vmatprep.subr.mxu0 0.0
        %600 = vmatpush1.msra.mxu0 0.0
        %601 = vmatprep.subr.mxu0 0.0
        %602 = vmatpush1.msra.mxu0 0.0
        %603 = vmatprep.subr.mxu0 0.0
        %604 = vmatpush1.msra.mxu0 0.0
        %605 = vmatprep.subr.mxu0 0.0
        %606 = vmatpush1.msra.mxu0 0.0
        %607 = vmatprep.subr.mxu0 0.0
        %608 = vmatpush1.msra.mxu0 0.0
        %609 = vmatprep.subr.mxu0 0.0
        %610 = vmatpush1.msra.mxu0 0.0
        %611 = vmatprep.subr.mxu0 0.0
        %612 = vmatpush1.msra.mxu0 0.0
        %613 = vmatprep.subr.mxu0 0.0
        %614 = vmatpush1.msra.mxu0 0.0
        %615 = vmatprep.subr.mxu0 0.0
        %616 = vmatpush1.msra.mxu0 0.0
        %617 = vmatprep.subr.mxu0 0.0
        %618 = vmatpush1.msra.mxu0 %v432
        %619 = vmatprep.subr.mxu0 0.0
        %620 = vmatpush1.msra.mxu0 %v427
        %621 = vmatprep.subr.mxu0 0.0
        %622 = vmatpush2.msra.mxu0 0.0
        %623 = vmatprep.subr.mxu0 0.0
        %624 = vmatpush2.msra.mxu0 0.0
        %625 = vmatprep.subr.mxu0 0.0
        %626 = vmatpush2.msra.mxu0 0.0
        %627 = vmatprep.subr.mxu0 0.0
        %628 = vmatpush2.msra.mxu0 0.0
        %629 = vmatprep.subr.mxu0 0.0
        %630 = vmatpush2.msra.mxu0 0.0
        %631 = vmatprep.subr.mxu0 0.0
        %632 = vmatpush2.msra.mxu0 0.0
        %633 = vmatprep.subr.mxu0 0.0
        %634 = vmatpush2.msra.mxu0 0.0
        %635 = vmatprep.subr.mxu0 0.0
        %636 = vmatpush2.msra.mxu0 0.0
        %637 = vmatprep.subr.mxu0 0.0
        %638 = vmatpush2.msra.mxu0 0.0
        %639 = vmatprep.subr.mxu0 0.0
        %640 = vmatpush2.msra.mxu0 0.0
        %641 = vmatprep.subr.mxu0 0.0
        %642 = vmatpush2.msra.mxu0 0.0
        %643 = vmatprep.subr.mxu0 0.0
        %644 = vmatpush2.msra.mxu0 0.0
        %645 = vmatprep.subr.mxu0 0.0
        %646 = vmatpush2.msra.mxu0 0.0
        %647 = vmatprep.subr.mxu0 0.0
        %648 = vmatpush2.msra.mxu0 0.0
        %649 = vmatprep.subr.mxu0 0.0
        %650 = vmatpush2.msra.mxu0 0.0
        %651 = vmatprep.subr.mxu0 0.0
        %652 = vmatpush2.msra.mxu0 0.0
        %653 = vmatprep.mubr.f32.mxu0 0.0
        %654 = vmatmul.mubr.f32.gmra.mxu0 %v447
        %v655 = vpop.f32.mrf.mxu0
        %v656 = vadd.f32 0.0, %v655
        %v657 = vpop.f32.mrf.mxu0
        %658 = vdwg.mxu0
        %659 = vmatprep.subr.mxu0 0.0
        %660 = vmatpush1.msra.mxu0 0.0
        %661 = vmatprep.subr.mxu0 0.0
        %662 = vmatpush1.msra.mxu0 0.0
        %663 = vmatprep.subr.mxu0 0.0
        %664 = vmatpush1.msra.mxu0 0.0
        %665 = vmatprep.subr.mxu0 0.0
        %666 = vmatpush1.msra.mxu0 0.0
        %667 = vmatprep.subr.mxu0 0.0
        %668 = vmatpush1.msra.mxu0 0.0
        %669 = vmatprep.subr.mxu0 0.0
        %670 = vmatpush1.msra.mxu0 0.0
        %671 = vmatprep.subr.mxu0 0.0
        %672 = vmatpush1.msra.mxu0 0.0
        %673 = vmatprep.subr.mxu0 0.0
        %674 = vmatpush1.msra.mxu0 0.0
        %675 = vmatprep.subr.mxu0 0.0
        %676 = vmatpush1.msra.mxu0 0.0
        %677 = vmatprep.subr.mxu0 0.0
        %678 = vmatpush1.msra.mxu0 0.0
        %679 = vmatprep.subr.mxu0 0.0
        %680 = vmatpush1.msra.mxu0 0.0
        %681 = vmatprep.subr.mxu0 0.0
        %682 = vmatpush1.msra.mxu0 0.0
        %683 = vmatprep.subr.mxu0 0.0
        %684 = vmatpush1.msra.mxu0 0.0
        %685 = vmatprep.subr.mxu0 0.0
        %686 = vmatpush1.msra.mxu0 0.0
        %687 = vmatprep.subr.mxu0 0.0
        %688 = vmatpush1.msra.mxu0 %v442
        %689 = vmatprep.subr.mxu0 0.0
        %690 = vmatpush1.msra.mxu0 %v437
        %691 = vmatprep.subr.mxu0 0.0
        %692 = vmatpush2.msra.mxu0 0.0
        %693 = vmatprep.subr.mxu0 0.0
        %694 = vmatpush2.msra.mxu0 0.0
        %695 = vmatprep.subr.mxu0 0.0
        %696 = vmatpush2.msra.mxu0 0.0
        %697 = vmatprep.subr.mxu0 0.0
        %698 = vmatpush2.msra.mxu0 0.0
        %699 = vmatprep.subr.mxu0 0.0
        %700 = vmatpush2.msra.mxu0 0.0
        %701 = vmatprep.subr.mxu0 0.0
        %702 = vmatpush2.msra.mxu0 0.0
        %703 = vmatprep.subr.mxu0 0.0
        %704 = vmatpush2.msra.mxu0 0.0
        %705 = vmatprep.subr.mxu0 0.0
        %706 = vmatpush2.msra.mxu0 0.0
        %707 = vmatprep.subr.mxu0 0.0
        %708 = vmatpush2.msra.mxu0 0.0
        %709 = vmatprep.subr.mxu0 0.0
        %710 = vmatpush2.msra.mxu0 0.0
        %711 = vmatprep.subr.mxu0 0.0
        %712 = vmatpush2.msra.mxu0 0.0
        %713 = vmatprep.subr.mxu0 0.0
        %714 = vmatpush2.msra.mxu0 0.0
        %715 = vmatprep.subr.mxu0 0.0
        %716 = vmatpush2.msra.mxu0 0.0
        %717 = vmatprep.subr.mxu0 0.0
        %718 = vmatpush2.msra.mxu0 0.0
        %719 = vmatprep.subr.mxu0 0.0
        %720 = vmatpush2.msra.mxu0 0.0
        %721 = vmatprep.subr.mxu0 0.0
        %722 = vmatpush2.msra.mxu0 0.0
        %723 = vmatprep.mubr.f32.mxu0 0.0
        %724 = vmatmul.mubr.f32.gmra.mxu0 %v447
        %v725 = vpop.f32.mrf.mxu0
        %v726 = vadd.f32 0.0, %v725
        %v727 = vpop.f32.mrf.mxu0
        %728 = vdwg.mxu0
        %vm729 = vcmask 64512
        %730 = vst.msk [vmem:[%s294] sm:$0xff] %vm729, %v516
        %731 = vst.msk [vmem:[%s294 + $0x8] sm:$0xff] %vm729, %v586
        %732 = vst.msk [vmem:[%s294 + $0x10] sm:$0xff] %vm729, %v656
        %733 = vst.msk [vmem:[%s294 + $0x18] sm:$0xff] %vm729, %v726
        %v734 = vld [vmem:[%s4] sm:$0xff]
        %v735 = vld [vmem:[%s4 + $0x8] sm:$0xff]
        %736 = vmatprep.subr.mxu0 0.0
        %737 = vmatpush1.msra.mxu0 0.0
        %738 = vmatprep.subr.mxu0 0.0
        %739 = vmatpush1.msra.mxu0 0.0
        %740 = vmatprep.subr.mxu0 0.0
        %741 = vmatpush1.msra.mxu0 0.0
        %742 = vmatprep.subr.mxu0 0.0
        %743 = vmatpush1.msra.mxu0 0.0
        %744 = vmatprep.subr.mxu0 0.0
        %745 = vmatpush1.msra.mxu0 0.0
        %746 = vmatprep.subr.mxu0 0.0
        %747 = vmatpush1.msra.mxu0 0.0
        %748 = vmatprep.subr.mxu0 0.0
        %749 = vmatpush1.msra.mxu0 0.0
        %750 = vmatprep.subr.mxu0 0.0
        %751 = vmatpush1.msra.mxu0 0.0
        %752 = vmatprep.subr.mxu0 0.0
        %753 = vmatpush1.msra.mxu0 0.0
        %754 = vmatprep.subr.mxu0 0.0
        %755 = vmatpush1.msra.mxu0 0.0
        %756 = vmatprep.subr.mxu0 0.0
        %757 = vmatpush1.msra.mxu0 0.0
        %758 = vmatprep.subr.mxu0 0.0
        %759 = vmatpush1.msra.mxu0 0.0
        %760 = vmatprep.subr.mxu0 0.0
        %761 = vmatpush1.msra.mxu0 0.0
        %762 = vmatprep.subr.mxu0 0.0
        %763 = vmatpush1.msra.mxu0 0.0
        %764 = vmatprep.subr.mxu0 0.0
        %765 = vmatpush1.msra.mxu0 %v735
        %766 = vmatprep.subr.mxu0 0.0
        %767 = vmatpush1.msra.mxu0 %v734
        %768 = vmatprep.subr.mxu0 0.0
        %769 = vmatpush2.msra.mxu0 0.0
        %770 = vmatprep.subr.mxu0 0.0
        %771 = vmatpush2.msra.mxu0 0.0
        %772 = vmatprep.subr.mxu0 0.0
        %773 = vmatpush2.msra.mxu0 0.0
        %774 = vmatprep.subr.mxu0 0.0
        %775 = vmatpush2.msra.mxu0 0.0
        %776 = vmatprep.subr.mxu0 0.0
        %777 = vmatpush2.msra.mxu0 0.0
        %778 = vmatprep.subr.mxu0 0.0
        %779 = vmatpush2.msra.mxu0 0.0
        %780 = vmatprep.subr.mxu0 0.0
        %781 = vmatpush2.msra.mxu0 0.0
        %782 = vmatprep.subr.mxu0 0.0
        %783 = vmatpush2.msra.mxu0 0.0
        %784 = vmatprep.subr.mxu0 0.0
        %785 = vmatpush2.msra.mxu0 0.0
        %786 = vmatprep.subr.mxu0 0.0
        %787 = vmatpush2.msra.mxu0 0.0
        %788 = vmatprep.subr.mxu0 0.0
        %789 = vmatpush2.msra.mxu0 0.0
        %790 = vmatprep.subr.mxu0 0.0
        %791 = vmatpush2.msra.mxu0 0.0
        %792 = vmatprep.subr.mxu0 0.0
        %793 = vmatpush2.msra.mxu0 0.0
        %794 = vmatprep.subr.mxu0 0.0
        %795 = vmatpush2.msra.mxu0 0.0
        %796 = vmatprep.subr.mxu0 0.0
        %797 = vmatpush2.msra.mxu0 0.0
        %798 = vmatprep.subr.mxu0 0.0
        %799 = vmatpush2.msra.mxu0 0.0
        %800 = vmatprep.mubr.f32.mxu0 0.0
        %801 = vmatmul.mubr.f32.gmra.mxu0 %v317
        %v802 = vpop.f32.mrf.mxu0
        %v803 = vadd.f32 0.0, %v802
        %v804 = vpop.f32.mrf.mxu0
        %805 = vmatprep.mubr.f32.mxu0 0.0
        %806 = vmatmul.mubr.f32.gmra.mxu0 %v320
        %v807 = vpop.f32.mrf.mxu0
        %v808 = vadd.f32 0.0, %v807
        %v809 = vpop.f32.mrf.mxu0
        %810 = vmatprep.mubr.f32.mxu0 0.0
        %811 = vmatmul.mubr.f32.gmra.mxu0 %v323
        %v812 = vpop.f32.mrf.mxu0
        %v813 = vadd.f32 0.0, %v812
        %v814 = vpop.f32.mrf.mxu0
        %815 = vmatprep.mubr.f32.mxu0 0.0
        %816 = vmatmul.mubr.f32.gmra.mxu0 %v326
        %v817 = vpop.f32.mrf.mxu0
        %v818 = vadd.f32 0.0, %v817
        %v819 = vpop.f32.mrf.mxu0
        %820 = vmatprep.mubr.f32.mxu0 0.0
        %821 = vmatmul.mubr.f32.gmra.mxu0 %v329
        %v822 = vpop.f32.mrf.mxu0
        %v823 = vadd.f32 0.0, %v822
        %v824 = vpop.f32.mrf.mxu0
        %825 = vmatprep.mubr.f32.mxu0 0.0
        %826 = vmatmul.mubr.f32.gmra.mxu0 %v332
        %v827 = vpop.f32.mrf.mxu0
        %v828 = vadd.f32 0.0, %v827
        %v829 = vpop.f32.mrf.mxu0
        %830 = vmatprep.mubr.f32.mxu0 0.0
        %831 = vmatmul.mubr.f32.gmra.mxu0 %v335
        %v832 = vpop.f32.mrf.mxu0
        %v833 = vadd.f32 0.0, %v832
        %v834 = vpop.f32.mrf.mxu0
        %835 = vmatprep.mubr.f32.mxu0 0.0
        %836 = vmatmul.mubr.f32.gmra.mxu0 %v338
        %v837 = vpop.f32.mrf.mxu0
        %v838 = vadd.f32 0.0, %v837
        %v839 = vpop.f32.mrf.mxu0
        %840 = vdwg.mxu0
        %v841 = vld [vmem:[%s3] sm:$0xf]
        %v843 = vsel %vm315, %v841, 0
        %845 = vmatprep.subr.mxu0 0.0
        %846 = vmatpush1.msra.mxu0 0.0
        %847 = vmatprep.subr.mxu0 0.0
        %848 = vmatpush1.msra.mxu0 0.0
        %849 = vmatprep.subr.mxu0 0.0
        %850 = vmatpush1.msra.mxu0 0.0
        %851 = vmatprep.subr.mxu0 0.0
        %852 = vmatpush1.msra.mxu0 0.0
        %853 = vmatprep.subr.mxu0 0.0
        %854 = vmatpush1.msra.mxu0 0.0
        %855 = vmatprep.subr.mxu0 0.0
        %856 = vmatpush1.msra.mxu0 0.0
        %857 = vmatprep.subr.mxu0 0.0
        %858 = vmatpush1.msra.mxu0 0.0
        %859 = vmatprep.subr.mxu0 0.0
        %860 = vmatpush1.msra.mxu0 0.0
        %861 = vmatprep.subr.mxu0 0.0
        %862 = vmatpush1.msra.mxu0 0.0
        %863 = vmatprep.subr.mxu0 0.0
        %864 = vmatpush1.msra.mxu0 0.0
        %865 = vmatprep.subr.mxu0 0.0
        %866 = vmatpush1.msra.mxu0 0.0
        %867 = vmatprep.subr.mxu0 0.0
        %868 = vmatpush1.msra.mxu0 0.0
        %869 = vmatprep.subr.mxu0 0.0
        %870 = vmatpush1.msra.mxu0 0.0
        %871 = vmatprep.subr.mxu0 0.0
        %872 = vmatpush1.msra.mxu0 0.0
        %873 = vmatprep.subr.mxu0 0.0
        %874 = vmatpush1.msra.mxu0 %v808
        %875 = vmatprep.subr.mxu0 0.0
        %876 = vmatpush1.msra.mxu0 %v803
        %877 = vmatprep.subr.mxu0 0.0
        %878 = vmatpush2.msra.mxu0 0.0
        %879 = vmatprep.subr.mxu0 0.0
        %880 = vmatpush2.msra.mxu0 0.0
        %881 = vmatprep.subr.mxu0 0.0
        %882 = vmatpush2.msra.mxu0 0.0
        %883 = vmatprep.subr.mxu0 0.0
        %884 = vmatpush2.msra.mxu0 0.0
        %885 = vmatprep.subr.mxu0 0.0
        %886 = vmatpush2.msra.mxu0 0.0
        %887 = vmatprep.subr.mxu0 0.0
        %888 = vmatpush2.msra.mxu0 0.0
        %889 = vmatprep.subr.mxu0 0.0
        %890 = vmatpush2.msra.mxu0 0.0
        %891 = vmatprep.subr.mxu0 0.0
        %892 = vmatpush2.msra.mxu0 0.0
        %893 = vmatprep.subr.mxu0 0.0
        %894 = vmatpush2.msra.mxu0 0.0
        %895 = vmatprep.subr.mxu0 0.0
        %896 = vmatpush2.msra.mxu0 0.0
        %897 = vmatprep.subr.mxu0 0.0
        %898 = vmatpush2.msra.mxu0 0.0
        %899 = vmatprep.subr.mxu0 0.0
        %900 = vmatpush2.msra.mxu0 0.0
        %901 = vmatprep.subr.mxu0 0.0
        %902 = vmatpush2.msra.mxu0 0.0
        %903 = vmatprep.subr.mxu0 0.0
        %904 = vmatpush2.msra.mxu0 0.0
        %905 = vmatprep.subr.mxu0 0.0
        %906 = vmatpush2.msra.mxu0 0.0
        %907 = vmatprep.subr.mxu0 0.0
        %908 = vmatpush2.msra.mxu0 0.0
        %909 = vmatprep.mubr.f32.mxu0 0.0
        %910 = vmatmul.mubr.f32.gmra.mxu0 %v843
        %v911 = vpop.f32.mrf.mxu0
        %v912 = vadd.f32 0.0, %v911
        %v913 = vpop.f32.mrf.mxu0
        %914 = vdwg.mxu0
        %915 = vmatprep.subr.mxu0 0.0
        %916 = vmatpush1.msra.mxu0 0.0
        %917 = vmatprep.subr.mxu0 0.0
        %918 = vmatpush1.msra.mxu0 0.0
        %919 = vmatprep.subr.mxu0 0.0
        %920 = vmatpush1.msra.mxu0 0.0
        %921 = vmatprep.subr.mxu0 0.0
        %922 = vmatpush1.msra.mxu0 0.0
        %923 = vmatprep.subr.mxu0 0.0
        %924 = vmatpush1.msra.mxu0 0.0
        %925 = vmatprep.subr.mxu0 0.0
        %926 = vmatpush1.msra.mxu0 0.0
        %927 = vmatprep.subr.mxu0 0.0
        %928 = vmatpush1.msra.mxu0 0.0
        %929 = vmatprep.subr.mxu0 0.0
        %930 = vmatpush1.msra.mxu0 0.0
        %931 = vmatprep.subr.mxu0 0.0
        %932 = vmatpush1.msra.mxu0 0.0
        %933 = vmatprep.subr.mxu0 0.0
        %934 = vmatpush1.msra.mxu0 0.0
        %935 = vmatprep.subr.mxu0 0.0
        %936 = vmatpush1.msra.mxu0 0.0
        %937 = vmatprep.subr.mxu0 0.0
        %938 = vmatpush1.msra.mxu0 0.0
        %939 = vmatprep.subr.mxu0 0.0
        %940 = vmatpush1.msra.mxu0 0.0
        %941 = vmatprep.subr.mxu0 0.0
        %942 = vmatpush1.msra.mxu0 0.0
        %943 = vmatprep.subr.mxu0 0.0
        %944 = vmatpush1.msra.mxu0 %v818
        %945 = vmatprep.subr.mxu0 0.0
        %946 = vmatpush1.msra.mxu0 %v813
        %947 = vmatprep.subr.mxu0 0.0
        %948 = vmatpush2.msra.mxu0 0.0
        %949 = vmatprep.subr.mxu0 0.0
        %950 = vmatpush2.msra.mxu0 0.0
        %951 = vmatprep.subr.mxu0 0.0
        %952 = vmatpush2.msra.mxu0 0.0
        %953 = vmatprep.subr.mxu0 0.0
        %954 = vmatpush2.msra.mxu0 0.0
        %955 = vmatprep.subr.mxu0 0.0
        %956 = vmatpush2.msra.mxu0 0.0
        %957 = vmatprep.subr.mxu0 0.0
        %958 = vmatpush2.msra.mxu0 0.0
        %959 = vmatprep.subr.mxu0 0.0
        %960 = vmatpush2.msra.mxu0 0.0
        %961 = vmatprep.subr.mxu0 0.0
        %962 = vmatpush2.msra.mxu0 0.0
        %963 = vmatprep.subr.mxu0 0.0
        %964 = vmatpush2.msra.mxu0 0.0
        %965 = vmatprep.subr.mxu0 0.0
        %966 = vmatpush2.msra.mxu0 0.0
        %967 = vmatprep.subr.mxu0 0.0
        %968 = vmatpush2.msra.mxu0 0.0
        %969 = vmatprep.subr.mxu0 0.0
        %970 = vmatpush2.msra.mxu0 0.0
        %971 = vmatprep.subr.mxu0 0.0
        %972 = vmatpush2.msra.mxu0 0.0
        %973 = vmatprep.subr.mxu0 0.0
        %974 = vmatpush2.msra.mxu0 0.0
        %975 = vmatprep.subr.mxu0 0.0
        %976 = vmatpush2.msra.mxu0 0.0
        %977 = vmatprep.subr.mxu0 0.0
        %978 = vmatpush2.msra.mxu0 0.0
        %979 = vmatprep.mubr.f32.mxu0 0.0
        %980 = vmatmul.mubr.f32.gmra.mxu0 %v843
        %v981 = vpop.f32.mrf.mxu0
        %v982 = vadd.f32 0.0, %v981
        %v983 = vpop.f32.mrf.mxu0
        %984 = vdwg.mxu0
        %985 = vmatprep.subr.mxu0 0.0
        %986 = vmatpush1.msra.mxu0 0.0
        %987 = vmatprep.subr.mxu0 0.0
        %988 = vmatpush1.msra.mxu0 0.0
        %989 = vmatprep.subr.mxu0 0.0
        %990 = vmatpush1.msra.mxu0 0.0
        %991 = vmatprep.subr.mxu0 0.0
        %992 = vmatpush1.msra.mxu0 0.0
        %993 = vmatprep.subr.mxu0 0.0
        %994 = vmatpush1.msra.mxu0 0.0
        %995 = vmatprep.subr.mxu0 0.0
        %996 = vmatpush1.msra.mxu0 0.0
        %997 = vmatprep.subr.mxu0 0.0
        %998 = vmatpush1.msra.mxu0 0.0
        %999 = vmatprep.subr.mxu0 0.0
        %1000 = vmatpush1.msra.mxu0 0.0
        %1001 = vmatprep.subr.mxu0 0.0
        %1002 = vmatpush1.msra.mxu0 0.0
        %1003 = vmatprep.subr.mxu0 0.0
        %1004 = vmatpush1.msra.mxu0 0.0
        %1005 = vmatprep.subr.mxu0 0.0
        %1006 = vmatpush1.msra.mxu0 0.0
        %1007 = vmatprep.subr.mxu0 0.0
        %1008 = vmatpush1.msra.mxu0 0.0
        %1009 = vmatprep.subr.mxu0 0.0
        %1010 = vmatpush1.msra.mxu0 0.0
        %1011 = vmatprep.subr.mxu0 0.0
        %1012 = vmatpush1.msra.mxu0 0.0
        %1013 = vmatprep.subr.mxu0 0.0
        %1014 = vmatpush1.msra.mxu0 %v828
        %1015 = vmatprep.subr.mxu0 0.0
        %1016 = vmatpush1.msra.mxu0 %v823
        %1017 = vmatprep.subr.mxu0 0.0
        %1018 = vmatpush2.msra.mxu0 0.0
        %1019 = vmatprep.subr.mxu0 0.0
        %1020 = vmatpush2.msra.mxu0 0.0
        %1021 = vmatprep.subr.mxu0 0.0
        %1022 = vmatpush2.msra.mxu0 0.0
        %1023 = vmatprep.subr.mxu0 0.0
        %1024 = vmatpush2.msra.mxu0 0.0
        %1025 = vmatprep.subr.mxu0 0.0
        %1026 = vmatpush2.msra.mxu0 0.0
        %1027 = vmatprep.subr.mxu0 0.0
        %1028 = vmatpush2.msra.mxu0 0.0
        %1029 = vmatprep.subr.mxu0 0.0
        %1030 = vmatpush2.msra.mxu0 0.0
        %1031 = vmatprep.subr.mxu0 0.0
        %1032 = vmatpush2.msra.mxu0 0.0
        %1033 = vmatprep.subr.mxu0 0.0
        %1034 = vmatpush2.msra.mxu0 0.0
        %1035 = vmatprep.subr.mxu0 0.0
        %1036 = vmatpush2.msra.mxu0 0.0
        %1037 = vmatprep.subr.mxu0 0.0
        %1038 = vmatpush2.msra.mxu0 0.0
        %1039 = vmatprep.subr.mxu0 0.0
        %1040 = vmatpush2.msra.mxu0 0.0
        %1041 = vmatprep.subr.mxu0 0.0
        %1042 = vmatpush2.msra.mxu0 0.0
        %1043 = vmatprep.subr.mxu0 0.0
        %1044 = vmatpush2.msra.mxu0 0.0
        %1045 = vmatprep.subr.mxu0 0.0
        %1046 = vmatpush2.msra.mxu0 0.0
        %1047 = vmatprep.subr.mxu0 0.0
        %1048 = vmatpush2.msra.mxu0 0.0
        %1049 = vmatprep.mubr.f32.mxu0 0.0
        %1050 = vmatmul.mubr.f32.gmra.mxu0 %v843
        %v1051 = vpop.f32.mrf.mxu0
        %v1052 = vadd.f32 0.0, %v1051
        %v1053 = vpop.f32.mrf.mxu0
        %1054 = vdwg.mxu0
        %1055 = vmatprep.subr.mxu0 0.0
        %1056 = vmatpush1.msra.mxu0 0.0
        %1057 = vmatprep.subr.mxu0 0.0
        %1058 = vmatpush1.msra.mxu0 0.0
        %1059 = vmatprep.subr.mxu0 0.0
        %1060 = vmatpush1.msra.mxu0 0.0
        %1061 = vmatprep.subr.mxu0 0.0
        %1062 = vmatpush1.msra.mxu0 0.0
        %1063 = vmatprep.subr.mxu0 0.0
        %1064 = vmatpush1.msra.mxu0 0.0
        %1065 = vmatprep.subr.mxu0 0.0
        %1066 = vmatpush1.msra.mxu0 0.0
        %1067 = vmatprep.subr.mxu0 0.0
        %1068 = vmatpush1.msra.mxu0 0.0
        %1069 = vmatprep.subr.mxu0 0.0
        %1070 = vmatpush1.msra.mxu0 0.0
        %1071 = vmatprep.subr.mxu0 0.0
        %1072 = vmatpush1.msra.mxu0 0.0
        %1073 = vmatprep.subr.mxu0 0.0
        %1074 = vmatpush1.msra.mxu0 0.0
        %1075 = vmatprep.subr.mxu0 0.0
        %1076 = vmatpush1.msra.mxu0 0.0
        %1077 = vmatprep.subr.mxu0 0.0
        %1078 = vmatpush1.msra.mxu0 0.0
        %1079 = vmatprep.subr.mxu0 0.0
        %1080 = vmatpush1.msra.mxu0 0.0
        %1081 = vmatprep.subr.mxu0 0.0
        %1082 = vmatpush1.msra.mxu0 0.0
        %1083 = vmatprep.subr.mxu0 0.0
        %1084 = vmatpush1.msra.mxu0 %v838
        %1085 = vmatprep.subr.mxu0 0.0
        %1086 = vmatpush1.msra.mxu0 %v833
        %1087 = vmatprep.subr.mxu0 0.0
        %1088 = vmatpush2.msra.mxu0 0.0
        %1089 = vmatprep.subr.mxu0 0.0
        %1090 = vmatpush2.msra.mxu0 0.0
        %1091 = vmatprep.subr.mxu0 0.0
        %1092 = vmatpush2.msra.mxu0 0.0
        %1093 = vmatprep.subr.mxu0 0.0
        %1094 = vmatpush2.msra.mxu0 0.0
        %1095 = vmatprep.subr.mxu0 0.0
        %1096 = vmatpush2.msra.mxu0 0.0
        %1097 = vmatprep.subr.mxu0 0.0
        %1098 = vmatpush2.msra.mxu0 0.0
        %1099 = vmatprep.subr.mxu0 0.0
        %1100 = vmatpush2.msra.mxu0 0.0
        %1101 = vmatprep.subr.mxu0 0.0
        %1102 = vmatpush2.msra.mxu0 0.0
        %1103 = vmatprep.subr.mxu0 0.0
        %1104 = vmatpush2.msra.mxu0 0.0
        %1105 = vmatprep.subr.mxu0 0.0
        %1106 = vmatpush2.msra.mxu0 0.0
        %1107 = vmatprep.subr.mxu0 0.0
        %1108 = vmatpush2.msra.mxu0 0.0
        %1109 = vmatprep.subr.mxu0 0.0
        %1110 = vmatpush2.msra.mxu0 0.0
        %1111 = vmatprep.subr.mxu0 0.0
        %1112 = vmatpush2.msra.mxu0 0.0
        %1113 = vmatprep.subr.mxu0 0.0
        %1114 = vmatpush2.msra.mxu0 0.0
        %1115 = vmatprep.subr.mxu0 0.0
        %1116 = vmatpush2.msra.mxu0 0.0
        %1117 = vmatprep.subr.mxu0 0.0
        %1118 = vmatpush2.msra.mxu0 0.0
        %1119 = vmatprep.mubr.f32.mxu0 0.0
        %1120 = vmatmul.mubr.f32.gmra.mxu0 %v843
        %v1121 = vpop.f32.mrf.mxu0
        %v1122 = vadd.f32 0.0, %v1121
        %v1123 = vpop.f32.mrf.mxu0
        %1124 = vdwg.mxu0
        %vm1125 = vcmask 27648
        %1126 = vst.msk [vmem:[%s301] sm:$0xf] %vm1125, %v912
        %1127 = vst.msk [vmem:[%s301 + $0x4] sm:$0xf] %vm1125, %v982
        %1128 = vst.msk [vmem:[%s301 + $0x8] sm:$0xf] %vm1125, %v1052
        %1129 = vst.msk [vmem:[%s301 + $0xc] sm:$0xf] %vm1125, %v1122
        %s1130 = sand.u32 %s161, 1
        %s1131 = scalar_lea.sflag [#allocation4], %s1130
        %s1132 = sand.u32 %s161, 1
        %s1133 = smul.addr %s1132, 32
        %s1134 = scalar_lea.vmem [#allocation5], %s1133
        %s1135 = sand.u32 %s189, 1
        %s1136 = scalar_lea.sflag [#allocation7], %s1135
        %s1137 = sand.u32 %s189, 1
        %s1138 = smul.addr %s1137, 16
        %s1139 = scalar_lea.vmem [#allocation6], %s1138
        // Predicated region
        $region45: #{tpu_custom_call.1} parent=39 // pred_check
          %p1140 = pneg %p171
        $region46: #{tpu_custom_call.1} parent=39 // pred_check_branch
          %1142 = sbr.rel (%p1140) target = $region48
        $region47: #{tpu_custom_call.1} parent=39 // pred_region
          %s1143 = smul.u32 4, %s32
          %s1145 = ssub.s32 512, 512
          %1146 = vsyncadd %s1131, %s1145
          %s1147 = smul.addr %s31, 4
          %s1148 = sadd.s32 %s1143, %s1147
          %s1149 = smul.addr %s1148, 128
          %s1150 = scalar_lea.hbm %s5, %s1149
          %s1151 = sshll.u32 %s1134, 4
          %s1152 = int_to_ptr.vmem [resolvable:$true] %s1151
          %1157 = dma.vmem_to_hbm [thread:$0]  %s1152, 512, %s1150, %s1131, 128, 128, 8
        $region48: #{tpu_custom_call.1} parent=39 // pred_fallthru
          _
        // Predicated region
        $region49: #{tpu_custom_call.1} parent=39 // pred_check
          %p1158 = pneg %p199
        $region50: #{tpu_custom_call.1} parent=39 // pred_check_branch
          %1160 = sbr.rel (%p1158) target = $region52
        $region51: #{tpu_custom_call.1} parent=39 // pred_region
          %s1161 = smul.u32 4, %s32
          %s1163 = ssub.s32 256, 256
          %1164 = vsyncadd %s1136, %s1163
          %s1165 = smul.addr %s31, 4
          %s1166 = sadd.s32 %s1161, %s1165
          %s1167 = smul.addr %s1166, 64
          %s1168 = scalar_lea.hbm %s6, %s1167
          %s1169 = sshll.u32 %s1139, 4
          %s1170 = int_to_ptr.vmem [resolvable:$true] %s1169
          %1175 = dma.vmem_to_hbm [thread:$0]  %s1170, 256, %s1168, %s1136, 64, 64, 4
        $region52: #{tpu_custom_call.1} parent=39 // pred_fallthru
          _
      $region40: #{tpu_custom_call.1} parent=5 // pred_fallthru
        _
      %p1176 = scmp.le.s32.totalorder 2, %s22
      // Predicated region
      $region53: #{tpu_custom_call.1} parent=5 // pred_check
        %p1177 = pneg %p1176
      $region54: #{tpu_custom_call.1} parent=5 // pred_check_branch
        %1179 = sbr.rel (%p1177) target = $region56
      $region55: #{tpu_custom_call.1} parent=5 // pred_region
        %s1180 = ssub.s32 %s22, 2
        // Predicated region
        $region57: #{tpu_custom_call.1} parent=55 // pred_check
          %p1181 = pneg %p177
        $region58: #{tpu_custom_call.1} parent=55 // pred_check_branch
          %1183 = sbr.rel (%p1181) target = $region60
        $region59: #{tpu_custom_call.1} parent=55 // pred_region
          %s1184 = sand.u32 %s162, 1
          %s1185 = scalar_lea.sflag [#allocation4], %s1184
          %s1186 = sand.u32 %s162, 1
          %s1187 = smul.addr %s1186, 32
          %s1188 = scalar_lea.vmem [#allocation5], %s1187
          %1189 = dma.done %s1185, 512
        $region60: #{tpu_custom_call.1} parent=55 // pred_fallthru
          _
        // Predicated region
        $region61: #{tpu_custom_call.1} parent=55 // pred_check
          %p1190 = pneg %p205
        $region62: #{tpu_custom_call.1} parent=55 // pred_check_branch
          %1192 = sbr.rel (%p1190) target = $region64
        $region63: #{tpu_custom_call.1} parent=55 // pred_region
          %s1193 = sand.u32 %s190, 1
          %s1194 = scalar_lea.sflag [#allocation7], %s1193
          %s1195 = sand.u32 %s190, 1
          %s1196 = smul.addr %s1195, 16
          %s1197 = scalar_lea.vmem [#allocation6], %s1196
          %1198 = dma.done %s1194, 256
        $region64: #{tpu_custom_call.1} parent=55 // pred_fallthru
          _
      $region56: #{tpu_custom_call.1} parent=5 // pred_fallthru
        _
    $region6: #{tpu_custom_call.1} parent=1 // loop_footer
      %s26 = sadd.s32 1, %s22
    $region7: #{tpu_custom_call.1} parent=1 // loop_footer_branch
      %21 = sbr.rel target = $region3
    $region8: #{tpu_custom_call.1} parent=1 // loop_exit
      _
    %1199 = vsyncpa [#allocation3], 1
    %s1200 = scalar_lea.sflag [#allocation3], 1
    %1201 = vsyncpa %s1200, 1
    %1202 = vsyncpa [#allocation4], 1
    %s1203 = scalar_lea.sflag [#allocation4], 1
    %1204 = vsyncpa %s1203, 1
    %1205 = vsyncpa [#allocation7], 1
    %s1206 = scalar_lea.sflag [#allocation7], 1
    %1207 = vsyncpa %s1206, 1

</llo_original>
